<compile_context>
chip_gen: v7x
topology: tpu7x:2x2x1
jax: 0.10.0
libtpu: 0.0.40
codegen_flags: <defaults>
</compile_context>

<pallas_src>
import functools

import jax
import jax.numpy as jnp
from jax.experimental import pallas as pl
from jax.experimental.pallas import tpu as pltpu


_OUT_LANES = 128  # lane-dense partial-sum block per batch tile


def _round_up(a, b):
    return (a + b - 1) // b * b


def _center_loss_kernel(labels_sref, x_ref, centers_ref, out_ref, csel_ref,
                        *, batch, tile_b):
    """One batch tile: gather centers[labels], squared distance, clamp, partial sum."""
    t = pl.program_id(0)

    # Gather the center row for every sample in this tile
    # (scalar label read from SMEM -> dynamic row copy within VMEM).
    def gather_row(r, carry):
        lab = labels_sref[t * tile_b + r]
        csel_ref[pl.ds(r, 1), :] = centers_ref[pl.ds(lab, 1), :]
        return carry

    jax.lax.fori_loop(0, tile_b, gather_row, 0)

    x = x_ref[...].astype(jnp.float32)     # (tile_b, D)
    c = csel_ref[...]                      # (tile_b, D) = centers[labels] for this tile

    # Expanded form, matching the PyTorch reference: ||x||^2 + ||c||^2 - 2 x.c
    x_sq = jnp.sum(x * x, axis=1, keepdims=True)   # (tile_b, 1)
    c_sq = jnp.sum(c * c, axis=1, keepdims=True)   # (tile_b, 1)
    xc = jnp.sum(x * c, axis=1, keepdims=True)     # (tile_b, 1)
    d = x_sq + c_sq - 2.0 * xc
    d = jnp.clip(d, 1e-12, 1e12)

    # Zero out batch-padding rows.
    row_ids = t * tile_b + jax.lax.broadcasted_iota(jnp.int32, (tile_b, 1), 0)
    d = jnp.where(row_ids < batch, d, 0.0)

    # Lane-dense partial-sum block (same value splat across 128 lanes).
    out_ref[...] = jnp.broadcast_to(jnp.sum(d), (1, _OUT_LANES))


def center_loss(x, centers, labels, *, tile_b=512):
    """x: (B, D) float, centers: (C, D) float, labels: (B,) int -> scalar f32 loss."""
    x = x.astype(jnp.float32)
    centers = centers.astype(jnp.float32)
    B, D = x.shape
    C, _ = centers.shape

    tb = min(tile_b, _round_up(B, 8))      # sublane-aligned batch tile
    b_pad = _round_up(B, tb)
    n_tiles = b_pad // tb

    labels_p = jnp.zeros((b_pad,), jnp.int32).at[:B].set(labels.astype(jnp.int32))
    x_p = x if b_pad == B else jnp.pad(x, ((0, b_pad - B), (0, 0)))

    kernel = functools.partial(_center_loss_kernel, batch=B, tile_b=tb)

    partials = pl.pallas_call(
        kernel,
        out_shape=jax.ShapeDtypeStruct((1, n_tiles * _OUT_LANES), jnp.float32),
        grid_spec=pltpu.PrefetchScalarGridSpec(
            num_scalar_prefetch=1,                                   # labels -> SMEM
            grid=(n_tiles,),
            in_specs=[
                pl.BlockSpec((tb, D), lambda t, labels: (t, 0)),     # streamed x tile
                pl.BlockSpec((C, D), lambda t, labels: (0, 0)),      # centers resident
            ],
            out_specs=pl.BlockSpec((1, _OUT_LANES), lambda t, labels: (0, t)),
            scratch_shapes=[pltpu.VMEM((tb, D), jnp.float32)],       # gathered centers
        ),
        compiler_params=pltpu.CompilerParams(
            dimension_semantics=("parallel",),       # batch tiles independent (v7x megacore)
            vmem_limit_bytes=32 * 1024 * 1024,
        ),
    )(labels_p, x_p, centers)

    # Each of the B*(C-1) masked-out entries in the reference contributes
    # clamp(0, 1e-12, 1e12) = 1e-12; add that analytically.
    partial_sums = partials.reshape(n_tiles, _OUT_LANES)[:, 0]
    masked_out = jnp.float32(B * (C - 1) * 1e-12)
    return (jnp.sum(partial_sums) + masked_out) / jnp.float32(B)


def center_loss_ref(x, centers, labels):
    """Pure-JAX reference mirroring the PyTorch forward, for verification."""
    B = x.shape[0]
    C = centers.shape[0]
    distmat = (
        jnp.sum(x ** 2, axis=1, keepdims=True)
        + jnp.sum(centers ** 2, axis=1, keepdims=True).T
        - 2.0 * x @ centers.T
    )
    mask = (labels[:, None] == jnp.arange(C)[None, :]).astype(jnp.float32)
    dist = jnp.clip(distmat * mask, 1e-12, 1e12)
    return jnp.sum(dist) / B


if __name__ == "__main__":
    num_classes = 10
    feat_dim = 2

    key = jax.random.PRNGKey(0)
    k_x, k_c, k_l, k_x2, k_l2 = jax.random.split(key, 5)

    centers = jax.random.normal(k_c, (num_classes, feat_dim), dtype=jnp.float32)

    # Case 1: batch already sublane-aligned (no padding path).
    batch = 8
    x = jax.random.normal(k_x, (batch, feat_dim), dtype=jnp.float32)
    labels = jax.random.randint(k_l, (batch,), 0, num_classes, dtype=jnp.int32)
    loss = jax.block_until_ready(center_loss(x, centers, labels))
    ref = center_loss_ref(x, centers, labels)
    assert jnp.allclose(loss, ref, rtol=1e-5, atol=1e-5), (loss, ref)

    # Case 2: ragged batch (exercises in-kernel padding mask).
    batch2 = 13
    x2 = jax.random.normal(k_x2, (batch2, feat_dim), dtype=jnp.float32)
    labels2 = jax.random.randint(k_l2, (batch2,), 0, num_classes, dtype=jnp.int32)
    loss2 = jax.block_until_ready(center_loss(x2, centers, labels2))
    ref2 = center_loss_ref(x2, centers, labels2)
    assert jnp.allclose(loss2, ref2, rtol=1e-5, atol=1e-5), (loss2, ref2)

    print("KERNEL_OK")
</pallas_src>

<mosaic_0001>
module attributes {stable_mosaic.version = 11 : i64} {
  func.func @_center_loss_kernel(%arg0: i32, %arg1: memref<8xi32, #tpu.memory_space<smem>>, %arg2: memref<8x2xf32, #tpu.memory_space<vmem>>, %arg3: memref<10x2xf32, #tpu.memory_space<vmem>>, %arg4: memref<1x128xf32, #tpu.memory_space<vmem>>, %arg5: memref<8x2xf32, #tpu.memory_space<vmem>>) attributes {dimension_semantics = [#tpu.dimension_semantics<parallel>], iteration_bounds = array<i64: 1>, scalar_prefetch = 1 : i64, scratch_operands = 1 : i64, tpu.core_type = #tpu.core_type<tc>, window_params = [{transform_indices = @transform_0, window_bounds = array<i64: 8, 2>}, {pipeline_mode = #tpu.pipeline_mode<synchronous>, transform_indices = @transform_1, window_bounds = array<i64: 10, 2>}, {transform_indices = @transform_2, window_bounds = array<i64: 1, 128>}]} {
    %c0_i32 = arith.constant 0 : i32
    %c8_i32 = arith.constant 8 : i32
    %0 = arith.addi %c0_i32, %c8_i32 : i32
    %c1_i32 = arith.constant 1 : i32
    scf.for %arg6 = %c0_i32 to %0 step %c1_i32  : i32 {
      %c8_i32_15 = arith.constant 8 : i32
      %34 = arith.muli %arg0, %c8_i32_15 : i32
      %35 = arith.addi %34, %arg6 : i32
      %36 = arith.index_cast %35 : i32 to index
      %37 = memref.load %arg1[%36] : memref<8xi32, #tpu.memory_space<smem>>
      %38 = arith.index_cast %37 : i32 to index
      %c0_16 = arith.constant 0 : index
      %39 = vector.load %arg3[%38, %c0_16] : memref<10x2xf32, #tpu.memory_space<vmem>>, vector<1x2xf32>
      %40 = arith.index_cast %arg6 : i32 to index
      %c0_17 = arith.constant 0 : index
      %41 = vector.load %arg5[%40, %c0_17] : memref<8x2xf32, #tpu.memory_space<vmem>>, vector<1x2xf32>
      tpu.vector_store %arg5[%40, %c0_17], %39 {strides = array<i32>} : memref<8x2xf32, #tpu.memory_space<vmem>>, vector<1x2xf32>,
    }
    %c8_i32_0 = arith.constant 8 : i32
    %c0 = arith.constant 0 : index
    %c0_1 = arith.constant 0 : index
    %1 = vector.load %arg2[%c0, %c0_1] : memref<8x2xf32, #tpu.memory_space<vmem>>, vector<8x2xf32>
    %c0_2 = arith.constant 0 : index
    %c0_3 = arith.constant 0 : index
    %2 = vector.load %arg5[%c0_2, %c0_3] : memref<8x2xf32, #tpu.memory_space<vmem>>, vector<8x2xf32>
    %3 = arith.mulf %1, %1 : vector<8x2xf32>
    %cst = arith.constant dense<0.000000e+00> : vector<8xf32>
    %4 = vector.multi_reduction <add>, %3, %cst [1] : vector<8x2xf32> to vector<8xf32>
    %5 = vector.shape_cast %4 : vector<8xf32> to vector<8x1xf32>
    %6 = arith.mulf %2, %2 : vector<8x2xf32>
    %cst_4 = arith.constant dense<0.000000e+00> : vector<8xf32>
    %7 = vector.multi_reduction <add>, %6, %cst_4 [1] : vector<8x2xf32> to vector<8xf32>
    %8 = vector.shape_cast %7 : vector<8xf32> to vector<8x1xf32>
    %9 = arith.mulf %1, %2 : vector<8x2xf32>
    %cst_5 = arith.constant dense<0.000000e+00> : vector<8xf32>
    %10 = vector.multi_reduction <add>, %9, %cst_5 [1] : vector<8x2xf32> to vector<8xf32>
    %11 = vector.shape_cast %10 : vector<8xf32> to vector<8x1xf32>
    %12 = arith.addf %5, %8 : vector<8x1xf32>
    %cst_6 = arith.constant 2.000000e+00 : f32
    %13 = vector.broadcast %cst_6 : f32 to vector<8x1xf32>
    %14 = arith.mulf %13, %11 : vector<8x1xf32>
    %15 = arith.subf %12, %14 : vector<8x1xf32>
    %cst_7 = arith.constant 9.99999996E-13 : f32
    %cst_8 = arith.constant 9.99999995E+11 : f32
    %16 = vector.broadcast %cst_7 : f32 to vector<8x1xf32>
    %17 = arith.maximumf %16, %15 : vector<8x1xf32>
    %18 = vector.broadcast %cst_8 : f32 to vector<8x1xf32>
    %19 = arith.minimumf %18, %17 : vector<8x1xf32>
    %c8_i32_9 = arith.constant 8 : i32
    %20 = arith.muli %arg0, %c8_i32_9 : i32
    %21 = tpu.iota {dimensions = array<i32: 0>} : vector<8x1xi32>
    %22 = vector.broadcast %20 : i32 to vector<8x1xi32>
    %23 = arith.addi %22, %21 : vector<8x1xi32>
    %c8_i32_10 = arith.constant 8 : i32
    %24 = vector.broadcast %c8_i32_10 : i32 to vector<8x1xi32>
    %25 = arith.cmpi slt, %23, %24 : vector<8x1xi32>
    %cst_11 = arith.constant 0.000000e+00 : f32
    %26 = vector.broadcast %cst_11 : f32 to vector<8x1xf32>
    %27 = arith.select %25, %19, %26 : vector<8x1xi1>, vector<8x1xf32>
    %28 = vector.shape_cast %27 : vector<8x1xf32> to vector<1x8x1xf32>
    %cst_12 = arith.constant dense<0.000000e+00> : vector<1xf32>
    %29 = vector.multi_reduction <add>, %28, %cst_12 [1, 2] : vector<1x8x1xf32> to vector<1xf32>
    %30 = vector.shape_cast %29 : vector<1xf32> to vector<1x1x1xf32>
    %31 = vector.extract %30[0, 0, 0] : f32 from vector<1x1x1xf32>
    %32 = vector.broadcast %31 : f32 to vector<1x128xf32>
    %c0_13 = arith.constant 0 : index
    %c0_14 = arith.constant 0 : index
    %33 = vector.load %arg4[%c0_13, %c0_14] : memref<1x128xf32, #tpu.memory_space<vmem>>, vector<1x128xf32>
    tpu.vector_store %arg4[%c0_13, %c0_14], %32 {strides = array<i32>} : memref<1x128xf32, #tpu.memory_space<vmem>>, vector<1x128xf32>,
    return
  }
  func.func @transform_0(%arg0: i32, %arg1: memref<8xi32, #tpu.memory_space<smem>>) -> (i32, i32) {
    %c0_i32 = arith.constant 0 : i32
    %c0_i32_0 = arith.constant 0 : i32
    return %arg0, %c0_i32 : i32, i32
  }
  func.func @transform_1(%arg0: i32, %arg1: memref<8xi32, #tpu.memory_space<smem>>) -> (i32, i32) {
    %c0_i32 = arith.constant 0 : i32
    %c0_i32_0 = arith.constant 0 : i32
    %c0_i32_1 = arith.constant 0 : i32
    return %c0_i32, %c0_i32_0 : i32, i32
  }
  func.func @transform_2(%arg0: i32, %arg1: memref<8xi32, #tpu.memory_space<smem>>) -> (i32, i32) {
    %c0_i32 = arith.constant 0 : i32
    %c0_i32_0 = arith.constant 0 : i32
    return %c0_i32, %arg0 : i32, i32
  }
}

</mosaic_0001>

<llo_original>
// kernel: tpu_custom_call.1
$region0: #{tpu_custom_call.1}
  #allocation0 [shape = 'u32[]', space=smem, size = 0x4, offset = 0x4, fixed_abs, tag = 'smem constant byte address 0x4 - core index']
  #allocation1 [shape = 'u32[144,128]{1,0:T(1,128)}', space=vmem, size = 0x12000, scoped, tag = 'internal scratch']
  #allocation2 [shape = 'f32[8,2]{1,0:T(8,128)}', space=vmem, size = 0x1000, scoped, tag = 'scratch operand']
  #allocation3 [shape = 's32[1]{0}', space=sflag, size = 0x4, scoped, tag = 'scoped memory for tpu_custom_call.1']
  #allocation4 [shape = 'u8[512]{0}', space=smem, size = 0x200, scoped, tag = 'prefetched SMEM operand 0']
  %s0 = inlined_call_operand.vmem [shape: s32[8], index: 0, kind: input, shape index: {}]
  %s1 = inlined_call_operand.vmem [shape: f32[8,2], index: 1, kind: input, shape index: {}]
  %s2 = inlined_call_operand.vmem [shape: f32[10,2], index: 2, kind: input, shape index: {}]
  %s3 = inlined_call_operand.hbm [shape: f32[1,128], index: 3, kind: output, shape index: {}]
  %s4 = sld [smem:[#allocation0]]
  $region25: #{tpu_custom_call.1} parent=0
    _
  %s6 = ssub.s32 1, %s4
  %s7 = scalar_select 0, %s6, %s4
  %s8 = sshll.u32 %s0, 4
  %s9 = int_to_ptr.vmem [resolvable:$true] %s8
  %11 = dma.vmem_to_smem %s9, 16, [#allocation4], [#allocation3]
  %12 = dma.done [#allocation3], 16
  %13 = sfence
  $region1: #{tpu_custom_call.1} parent=0
    #allocation5 [shape = 'u8[512]{0}', space=vmem, size = 0x400, scoped, tag = 'output window, operand 0, single buffered']
    #allocation6 [shape = 's32[1]{0}', space=sflag, size = 0x4, scoped, tag = 'scoped memory for tpu_custom_call.1']
    %14 = vsyncpa [#allocation6], 0
    // Predicated region
    $region2: #{tpu_custom_call.1} parent=1 // pred_check
      _
    $region3: #{tpu_custom_call.1} parent=1 // pred_check_branch
      %16 = sbr.rel (0) target = $region5
    $region4: #{tpu_custom_call.1} parent=1 // pred_region
      _
    $region5: #{tpu_custom_call.1} parent=1 // pred_fallthru
      _
    // Predicated region
    $region6: #{tpu_custom_call.1} parent=1 // pred_check
      _
    $region7: #{tpu_custom_call.1} parent=1 // pred_check_branch
      %18 = sbr.rel (0) target = $region9
    $region8: #{tpu_custom_call.1} parent=1 // pred_region
      _
    $region9: #{tpu_custom_call.1} parent=1 // pred_fallthru
      _
    loop: start=0, step=1, limit=8
    $region10: #{tpu_custom_call.1} parent=1 // loop_pre_header
      _
    $region11: #{tpu_custom_call.1} parent=1 // loop_header
      %s20 = sphi 0, %s24
      %p21 = scmp.ge.s32.totalorder %s20, 8
    $region12: #{tpu_custom_call.1} parent=1 // loop_header_branch
      %23 = sbr.rel (%p21) target = $region16
    $region13: #{tpu_custom_call.1} parent=1 // loop_body
      %s25 = smul.u32 0, 8
      %s26 = sadd.s32 %s25, %s20
      %s27 = sld [smem:[#allocation4 + %s26]]
      %s28 = scalar_lea.vmem %s2, %s27
      %v29 = vld [vmem:[%s28] sm:$0x1]
      %s30 = scalar_lea.vmem [#allocation2], %s20
      %vm31 = vcmask 8192
      %32 = vst.msk [vmem:[%s30] sm:$0x1] %vm31, %v29
    $region14: #{tpu_custom_call.1} parent=1 // loop_footer
      %s24 = sadd.s32 1, %s20
    $region15: #{tpu_custom_call.1} parent=1 // loop_footer_branch
      %19 = sbr.rel target = $region11
    $region16: #{tpu_custom_call.1} parent=1 // loop_exit
      _
    %v33 = vld [vmem:[%s1] sm:$0xff]
    %v34 = vld [vmem:[#allocation2] sm:$0xff]
    %v35 = vmul.f32 %v33, %v33
    %vm36 = vcmask 15360
    %v37 = vsel %vm36, %v35, 0.0
    %38 = vadd.xlane.f32.xlu0 %v37
    %v39 = vpop.xlane.xlu0 %38
    %v40 = vmul.f32 %v34, %v34
    %v41 = vsel %vm36, %v40, 0.0
    %42 = vadd.xlane.f32.xlu0 %v41
    %v43 = vpop.xlane.xlu0 %42
    %v44 = vmul.f32 %v33, %v34
    %v45 = vsel %vm36, %v44, 0.0
    %46 = vadd.xlane.f32.xlu0 %v45
    %v47 = vpop.xlane.xlu0 %46
    %v48 = vadd.f32 %v39, %v43
    %v49 = vmul.f32 %v47, 2.0
    %v50 = vsub.f32 %v48, %v49
    %v51 = vmax.f32 %v50, 1e-12
    %v52 = vmin.f32 %v51, 1e+12
    %s53 = smul.u32 0, 8
    %v54 = vlaneseq
    %v55 = vshrl.u32 %v54, 7
    %v56 = vstv %s53
    %v57 = vadd.s32 %v56, %v55
    %vm58 = vcmp.lt.s32.totalorder %v57, 8
    %v59 = vsel %vm58, %v52, 0.0
    %vm60 = vcmask 7168
    %v61 = vsel %vm60, %v59, 0.0
    %62 = vadd.xlane.f32.xlu0 %v61
    %v63 = vpop.xlane.xlu0 %62
    %v64 = vrot.slane %v63, 4
    %v65 = vadd.f32 %v63, %v64
    %v66 = vrot.slane %v65, 2
    %v67 = vadd.f32 %v65, %v66
    %v68 = vrot.slane %v67, 1
    %v69 = vadd.f32 %v67, %v68
    %s70 = vtos %v69
    %v71 = vstv %s70
    %72 = vst [vmem:[#allocation5] sm:$0x1] %v71
    // Predicated region
    $region17: #{tpu_custom_call.1} parent=1 // pred_check
      _
    $region18: #{tpu_custom_call.1} parent=1 // pred_check_branch
      %74 = sbr.rel (0) target = $region20
    $region19: #{tpu_custom_call.1} parent=1 // pred_region
      %s76 = ssub.s32 16, 16
      %77 = vsyncadd [#allocation6], %s76
      %s79 = sshll.u32 [#allocation5], 4
      %s80 = int_to_ptr.vmem [resolvable:$true] %s79
      %82 = dma.vmem_to_hbm [thread:$0]  %s80, 16, %s3, [#allocation6]
    $region20: #{tpu_custom_call.1} parent=1 // pred_fallthru
      _
    // Predicated region
    $region21: #{tpu_custom_call.1} parent=1 // pred_check
      _
    $region22: #{tpu_custom_call.1} parent=1 // pred_check_branch
      %84 = sbr.rel (0) target = $region24
    $region23: #{tpu_custom_call.1} parent=1 // pred_region
      %85 = dma.done [#allocation6], 16
    $region24: #{tpu_custom_call.1} parent=1 // pred_fallthru
      _
    %86 = vsyncpa [#allocation6], 1

</llo_original>
